<compile_context>
chip_gen: v5e
topology: v5e:2x2
jax: 0.10.0
libtpu: 0.0.40
codegen_flags: <defaults>
</compile_context>

<pallas_src>
import jax
import jax.numpy as jnp
from jax.experimental import pallas as pl
from jax.experimental.pallas import tpu as pltpu


def _round_up(v: int, m: int) -> int:
    return ((v + m - 1) // m) * m


def _largest_tile(padded: int, unit: int, cap: int) -> int:
    """Largest multiple of `unit` that divides `padded` and is <= cap."""
    q = padded // unit
    best = 1
    for d in range(1, min(q, max(1, cap // unit)) + 1):
        if q % d == 0:
            best = d
    return unit * best


def _heat_kernel_f32(k_ref, xd_ref, a_ref, xk_ref, o_ref, rs_ref):
    """f32 output path: accumulate A @ x directly into the resident o_ref tile.

    Grid = (M tiles, N tiles, K tiles), K (reduction over A columns) last.
    Hot loop: MXU matmul + XLU rowsum only.  Diag correction + k scaling are
    done once in the kk==last finalize.
    """
    kk = pl.program_id(2)

    @pl.when(kk == 0)
    def _init():
        o_ref[...] = jnp.zeros_like(o_ref)
        rs_ref[...] = jnp.zeros_like(rs_ref)

    a = a_ref[...]
    o_ref[...] += jnp.dot(a, xk_ref[...], preferred_element_type=jnp.float32)  # MXU
    rs_ref[...] += jnp.sum(a, axis=-1, keepdims=True)                          # XLU

    @pl.when(kk == pl.num_programs(2) - 1)
    def _finalize():
        o_ref[...] = k_ref[0] * (o_ref[...] - rs_ref[...] * xd_ref[...])


def _heat_kernel_acc(k_ref, xd_ref, a_ref, xk_ref, o_ref, rs_ref, acc_ref):
    """Narrow-output path (e.g. bf16): f32 VMEM accumulator + f32 rowsum."""
    kk = pl.program_id(2)

    @pl.when(kk == 0)
    def _init():
        acc_ref[...] = jnp.zeros_like(acc_ref)
        rs_ref[...] = jnp.zeros_like(rs_ref)

    a = a_ref[...]
    acc_ref[...] += jnp.dot(a, xk_ref[...], preferred_element_type=jnp.float32)
    # Upcast before the reduction so high-degree rowsums don't lose precision.
    rs_ref[...] += jnp.sum(a.astype(jnp.float32), axis=-1, keepdims=True)

    @pl.when(kk == pl.num_programs(2) - 1)
    def _finalize():
        res = acc_ref[...] - rs_ref[...] * xd_ref[...].astype(jnp.float32)
        o_ref[...] = (k_ref[0] * res).astype(o_ref.dtype)


def heat_dynamics(A, x, k=0.5, *, tile_m=512, tile_n=1024, tile_k=512):
    """HeatDynamics.forward(t, x): t unused (autonomous system)."""
    n, dim = x.shape
    dtype = x.dtype
    A = A.astype(dtype)
    itemsize = jnp.dtype(dtype).itemsize
    sub = {4: 8, 2: 16, 1: 32}.get(itemsize, 8)  # sublane unit for this dtype

    # ---- Tile / padding selection ----------------------------------------
    # K (A's lane dim, reduction): minimal 128-lane padding; tk is the largest
    # multiple of 128 <= tile_k that exactly divides k_pad.
    k_pad = _round_up(n, 128)
    tk = _largest_tile(k_pad, 128, tile_k)

    # N (feature dim): one tile whenever dim_pad <= tile_n so A is streamed
    # from HBM exactly once; otherwise the largest 128-multiple divisor.
    # (For dim_pad > tile_n the A stream is re-read once per N tile — an
    #  in-kernel j loop would be needed to avoid that; acceptable fallback.)
    dim_pad = _round_up(dim, 128)
    tn = _largest_tile(dim_pad, 128, tile_n)

    # M: only needs sublane alignment, decoupled from the 128-lane K padding
    # so a small n is not rounded up to 128 rows of zero A traffic.
    tm = max(sub, min(tile_m, _round_up(n, sub)))
    m_pad = _round_up(n, tm)

    # v7x megacore: make sure both TensorCores get at least one (i, j) tile.
    if (m_pad // tm) * (dim_pad // tn) < 2 and tm % (2 * sub) == 0:
        tm //= 2

    grid = (m_pad // tm, dim_pad // tn, k_pad // tk)

    # ---- Padding (zero padding keeps the math exact; skipped if aligned) --
    if A.shape != (m_pad, k_pad):
        A = jnp.pad(A, ((0, m_pad - n), (0, k_pad - n)))
    rows_pad = max(m_pad, k_pad)  # one padded x serves both the xd and xk views
    if x.shape != (rows_pad, dim_pad):
        x_p = jnp.pad(x, ((0, rows_pad - n), (0, dim_pad - dim)))
    else:
        x_p = x
    k_arr = jnp.asarray([k], dtype=jnp.float32)  # runtime-variable k via SMEM

    # ---- Kernel / scratch selection ---------------------------------------
    out_is_f32 = dtype == jnp.dtype(jnp.float32)
    kernel = _heat_kernel_f32 if out_is_f32 else _heat_kernel_acc
    scratch = [pltpu.VMEM((tm, 1), jnp.float32)]          # rowsum accumulator
    if not out_is_f32:
        scratch.append(pltpu.VMEM((tm, tn), jnp.float32))  # f32 accumulator

    # ---- VMEM budget & cost hint ------------------------------------------
    buf_bytes = 2 * (tm * tk + tk * tn + 2 * tm * tn) * itemsize  # double-buffered I/O
    scratch_bytes = tm * 128 * 4 + (0 if out_is_f32 else tm * tn * 4)
    vmem_limit = min(48 * 1024 * 1024,                      # safe on v7x's 64 MiB VMEM
                     max(32 * 1024 * 1024, int(1.5 * (buf_bytes + scratch_bytes))))

    cost = pl.CostEstimate(
        flops=2 * m_pad * k_pad * dim_pad + 2 * m_pad * k_pad + 3 * m_pad * dim_pad,
        transcendentals=0,
        bytes_accessed=itemsize * (m_pad * k_pad + rows_pad * dim_pad
                                   + 2 * m_pad * dim_pad),
    )

    out = pl.pallas_call(
        kernel,
        out_shape=jax.ShapeDtypeStruct((m_pad, dim_pad), dtype),
        grid=grid,
        in_specs=[
            pl.BlockSpec(memory_space=pltpu.MemorySpace.SMEM),    # k scalar
            pl.BlockSpec((tm, tn), lambda i, j, kk: (i, j)),      # x, diag term (finalize only)
            pl.BlockSpec((tm, tk), lambda i, j, kk: (i, kk)),     # A tile (dominant stream)
            pl.BlockSpec((tk, tn), lambda i, j, kk: (kk, j)),     # x, matmul RHS
        ],
        out_specs=pl.BlockSpec((tm, tn), lambda i, j, kk: (i, j)),
        scratch_shapes=scratch,
        compiler_params=pltpu.CompilerParams(
            dimension_semantics=("parallel", "parallel", "arbitrary"),
            vmem_limit_bytes=vmem_limit,
        ),
        cost_estimate=cost,
    )(k_arr, x_p, A, x_p)

    return out[:n, :dim]


if __name__ == "__main__":
    key = jax.random.PRNGKey(0)
    k_a, k_x = jax.random.split(key)

    n, dim = 16, 32
    # Deterministic synthetic adjacency (symmetric, zero diagonal) and features.
    A = jax.random.uniform(k_a, (n, n), dtype=jnp.float32)
    A = 0.5 * (A + A.T)
    A = A * (1.0 - jnp.eye(n, dtype=jnp.float32))
    x = jax.random.normal(k_x, (n, dim), dtype=jnp.float32)

    # Reference in plain JAX: same math as the PyTorch module (explicit Laplacian).
    L_ref = -(jnp.diag(A.sum(axis=1)) - A)

    k = 0.5
    out = jax.block_until_ready(heat_dynamics(A, x, k=k))
    ref = k * jnp.dot(L_ref, x, precision=jax.lax.Precision.HIGHEST)
    assert out.shape == (n, dim)
    assert jnp.allclose(out, ref, atol=1e-4, rtol=1e-4)

    # Non-default k (runtime SMEM scalar, no recompile needed).
    out2 = jax.block_until_ready(heat_dynamics(A, x, k=0.7))
    ref2 = 0.7 * jnp.dot(L_ref, x, precision=jax.lax.Precision.HIGHEST)
    assert jnp.allclose(out2, ref2, atol=1e-4, rtol=1e-4)

    # bf16-streamed A / x (halves the dominant HBM stream); f32 accumulation
    # inside the kernel, loose tolerance for the bf16 input/output rounding.
    A_bf, x_bf = A.astype(jnp.bfloat16), x.astype(jnp.bfloat16)
    out_bf = jax.block_until_ready(heat_dynamics(A_bf, x_bf, k=k))
    L_bf = -(jnp.diag(A_bf.astype(jnp.float32).sum(axis=1)) - A_bf.astype(jnp.float32))
    ref_bf = k * jnp.dot(L_bf, x_bf.astype(jnp.float32),
                         precision=jax.lax.Precision.HIGHEST)
    assert jnp.allclose(out_bf.astype(jnp.float32), ref_bf, atol=5e-2, rtol=5e-2)

    print("KERNEL_OK")
</pallas_src>

<mosaic_0001>
module attributes {stable_mosaic.version = 11 : i64} {
  func.func @_heat_kernel_f32(%arg0: i32, %arg1: i32, %arg2: i32, %arg3: memref<1xf32, #tpu.memory_space<smem>>, %arg4: memref<8x128xf32, #tpu.memory_space<vmem>>, %arg5: memref<8x128xf32, #tpu.memory_space<vmem>>, %arg6: memref<128x128xf32, #tpu.memory_space<vmem>>, %arg7: memref<8x128xf32, #tpu.memory_space<vmem>>, %arg8: memref<8x1xf32, #tpu.memory_space<vmem>>) attributes {dimension_semantics = [#tpu.dimension_semantics<parallel>, #tpu.dimension_semantics<parallel>, #tpu.dimension_semantics<arbitrary>], iteration_bounds = array<i64: 2, 1, 1>, scalar_prefetch = 0 : i64, scratch_operands = 1 : i64, tpu.core_type = #tpu.core_type<tc>, window_params = [{transform_indices = @transform_0, window_bounds = array<i64: 1>}, {transform_indices = @transform_1, window_bounds = array<i64: 8, 128>}, {transform_indices = @transform_2, window_bounds = array<i64: 8, 128>}, {transform_indices = @transform_3, window_bounds = array<i64: 128, 128>}, {transform_indices = @transform_4, window_bounds = array<i64: 8, 128>}]} {
    %c0_i32 = arith.constant 0 : i32
    %0 = arith.cmpi eq, %arg2, %c0_i32 : i32
    %1 = arith.extui %0 : i1 to i32
    %c0_i32_0 = arith.constant 0 : i32
    %2 = arith.cmpi ne, %1, %c0_i32_0 : i32
    scf.if %2 {
      %cst_15 = arith.constant 0.000000e+00 : f32
      %17 = vector.broadcast %cst_15 : f32 to vector<8x128xf32>
      %c0_16 = arith.constant 0 : index
      %c0_17 = arith.constant 0 : index
      %18 = vector.load %arg7[%c0_16, %c0_17] : memref<8x128xf32, #tpu.memory_space<vmem>>, vector<8x128xf32>
      tpu.vector_store %arg7[%c0_16, %c0_17], %17 {strides = array<i32>} : memref<8x128xf32, #tpu.memory_space<vmem>>, vector<8x128xf32>,
      %cst_18 = arith.constant 0.000000e+00 : f32
      %19 = vector.broadcast %cst_18 : f32 to vector<8x1xf32>
      %c0_19 = arith.constant 0 : index
      %c0_20 = arith.constant 0 : index
      %20 = vector.load %arg8[%c0_19, %c0_20] : memref<8x1xf32, #tpu.memory_space<vmem>>, vector<8x1xf32>
      tpu.vector_store %arg8[%c0_19, %c0_20], %19 {strides = array<i32>} : memref<8x1xf32, #tpu.memory_space<vmem>>, vector<8x1xf32>,
    } else {
    }
    %c0 = arith.constant 0 : index
    %c0_1 = arith.constant 0 : index
    %3 = vector.load %arg5[%c0, %c0_1] : memref<8x128xf32, #tpu.memory_space<vmem>>, vector<8x128xf32>
    %c0_2 = arith.constant 0 : index
    %c0_3 = arith.constant 0 : index
    %4 = vector.load %arg7[%c0_2, %c0_3] : memref<8x128xf32, #tpu.memory_space<vmem>>, vector<8x128xf32>
    %c0_4 = arith.constant 0 : index
    %c0_5 = arith.constant 0 : index
    %5 = vector.load %arg6[%c0_4, %c0_5] : memref<128x128xf32, #tpu.memory_space<vmem>>, vector<128x128xf32>
    %cst = arith.constant dense<0.000000e+00> : vector<8x128xf32>
    %6 = tpu.matmul %3, %5, %cst {dimension_numbers = #tpu.dot_dimension_numbers<[1], [0], [0], [1], [0, 0, 1, 1], [], []>} : vector<8x128xf32>, vector<128x128xf32>, vector<8x128xf32> -> vector<8x128xf32>
    %7 = arith.addf %4, %6 : vector<8x128xf32>
    %c0_6 = arith.constant 0 : index
    %c0_7 = arith.constant 0 : index
    %8 = vector.load %arg7[%c0_6, %c0_7] : memref<8x128xf32, #tpu.memory_space<vmem>>, vector<8x128xf32>
    tpu.vector_store %arg7[%c0_6, %c0_7], %7 {strides = array<i32>} : memref<8x128xf32, #tpu.memory_space<vmem>>, vector<8x128xf32>,
    %c0_8 = arith.constant 0 : index
    %c0_9 = arith.constant 0 : index
    %9 = vector.load %arg8[%c0_8, %c0_9] : memref<8x1xf32, #tpu.memory_space<vmem>>, vector<8x1xf32>
    %cst_10 = arith.constant dense<0.000000e+00> : vector<8xf32>
    %10 = vector.multi_reduction <add>, %3, %cst_10 [1] : vector<8x128xf32> to vector<8xf32>
    %11 = vector.shape_cast %10 : vector<8xf32> to vector<8x1xf32>
    %12 = arith.addf %9, %11 : vector<8x1xf32>
    %c0_11 = arith.constant 0 : index
    %c0_12 = arith.constant 0 : index
    %13 = vector.load %arg8[%c0_11, %c0_12] : memref<8x1xf32, #tpu.memory_space<vmem>>, vector<8x1xf32>
    tpu.vector_store %arg8[%c0_11, %c0_12], %12 {strides = array<i32>} : memref<8x1xf32, #tpu.memory_space<vmem>>, vector<8x1xf32>,
    %c0_i32_13 = arith.constant 0 : i32
    %14 = arith.cmpi eq, %arg2, %c0_i32_13 : i32
    %15 = arith.extui %14 : i1 to i32
    %c0_i32_14 = arith.constant 0 : i32
    %16 = arith.cmpi ne, %15, %c0_i32_14 : i32
    scf.if %16 {
      %c0_15 = arith.constant 0 : index
      %17 = memref.load %arg3[%c0_15] : memref<1xf32, #tpu.memory_space<smem>>
      %c0_16 = arith.constant 0 : index
      %c0_17 = arith.constant 0 : index
      %18 = vector.load %arg7[%c0_16, %c0_17] : memref<8x128xf32, #tpu.memory_space<vmem>>, vector<8x128xf32>
      %c0_18 = arith.constant 0 : index
      %c0_19 = arith.constant 0 : index
      %19 = vector.load %arg8[%c0_18, %c0_19] : memref<8x1xf32, #tpu.memory_space<vmem>>, vector<8x1xf32>
      %c0_20 = arith.constant 0 : index
      %c0_21 = arith.constant 0 : index
      %20 = vector.load %arg4[%c0_20, %c0_21] : memref<8x128xf32, #tpu.memory_space<vmem>>, vector<8x128xf32>
      %21 = vector.broadcast %19 : vector<8x1xf32> to vector<8x128xf32>
      %22 = arith.mulf %21, %20 : vector<8x128xf32>
      %23 = arith.subf %18, %22 : vector<8x128xf32>
      %24 = vector.broadcast %17 : f32 to vector<8x128xf32>
      %25 = arith.mulf %24, %23 : vector<8x128xf32>
      %c0_22 = arith.constant 0 : index
      %c0_23 = arith.constant 0 : index
      %26 = vector.load %arg7[%c0_22, %c0_23] : memref<8x128xf32, #tpu.memory_space<vmem>>, vector<8x128xf32>
      tpu.vector_store %arg7[%c0_22, %c0_23], %25 {strides = array<i32>} : memref<8x128xf32, #tpu.memory_space<vmem>>, vector<8x128xf32>,
    } else {
    }
    return
  }
  func.func @transform_0(%arg0: i32, %arg1: i32, %arg2: i32) -> i32 {
    %c0_i32 = arith.constant 0 : i32
    %c0_i32_0 = arith.constant 0 : i32
    return %c0_i32 : i32
  }
  func.func @transform_1(%arg0: i32, %arg1: i32, %arg2: i32) -> (i32, i32) {
    %c0_i32 = arith.constant 0 : i32
    return %arg0, %arg1 : i32, i32
  }
  func.func @transform_2(%arg0: i32, %arg1: i32, %arg2: i32) -> (i32, i32) {
    %c0_i32 = arith.constant 0 : i32
    return %arg0, %arg2 : i32, i32
  }
  func.func @transform_3(%arg0: i32, %arg1: i32, %arg2: i32) -> (i32, i32) {
    %c0_i32 = arith.constant 0 : i32
    return %arg2, %arg1 : i32, i32
  }
  func.func @transform_4(%arg0: i32, %arg1: i32, %arg2: i32) -> (i32, i32) {
    %c0_i32 = arith.constant 0 : i32
    return %arg0, %arg1 : i32, i32
  }
}

</mosaic_0001>

<llo_original>
// kernel: tpu_custom_call.1
$region0: #{tpu_custom_call.1}
  #allocation0 [shape = 'u32[]', space=smem, size = 0x4, offset = 0x4, fixed_abs, tag = 'smem constant byte address 0x4 - core index']
  #allocation1 [shape = 'u32[72,128]{1,0:T(1,128)}', space=vmem, size = 0x9000, scoped, tag = 'internal scratch']
  #allocation2 [shape = 'f32[8,1]{1,0:T(8,128)}', space=vmem, size = 0x1000, scoped, tag = 'scratch operand']
  #allocation3 [shape = 'f32[1]{0:T(128)S(6)}', space=smem, size = 0x200, scoped, tag = 'scoped memory for tpu_custom_call.1']
  %s0 = inlined_call_operand.<no memory space> [shape: f32[1], index: 0, kind: input, shape index: {}]
  %s1 = inlined_call_operand.hbm [shape: f32[128,128], index: 1, kind: input, shape index: {}]
  %s2 = inlined_call_operand.hbm [shape: f32[16,128], index: 2, kind: input, shape index: {}]
  %s3 = inlined_call_operand.hbm [shape: f32[128,128], index: 3, kind: input, shape index: {}]
  %s4 = inlined_call_operand.hbm [shape: f32[16,128], index: 4, kind: output, shape index: {}]
  %s5 = sld [smem:[#allocation0]]
  $region69: #{tpu_custom_call.1} parent=0
    _
  %s7 = ssub.s32 1, %s5
  %s8 = scalar_select 0, %s7, %s5
  %9 = sst [smem:[#allocation3]] %s0
  $region1: #{tpu_custom_call.1} parent=0
    #allocation4 [shape = 'u8[8192]{0}', space=vmem, size = 0x2000, scoped, tag = 'input window, operand 1']
    #allocation5 [shape = 's32[2]{0}', space=sflag, size = 0x8, scoped, tag = 'scoped memory for tpu_custom_call.1']
    #allocation6 [shape = 's32[2]{0}', space=sflag, size = 0x8, scoped, tag = 'scoped memory for tpu_custom_call.1']
    #allocation7 [shape = 'u8[8192]{0}', space=vmem, size = 0x2000, scoped, tag = 'input window, operand 2']
    #allocation8 [shape = 's32[2]{0}', space=sflag, size = 0x8, scoped, tag = 'scoped memory for tpu_custom_call.1']
    #allocation9 [shape = 'u8[65536]{0}', space=vmem, size = 0x10000, scoped, tag = 'input window, operand 3, single buffered']
    #allocation10 [shape = 'u8[8192]{0}', space=vmem, size = 0x2000, scoped, tag = 'output window, operand 0']
    %10 = vsyncpa [#allocation5], 0
    %s11 = scalar_lea.sflag [#allocation5], 1
    %12 = vsyncpa %s11, 0
    %13 = vsyncpa [#allocation8], 0
    %s14 = scalar_lea.sflag [#allocation8], 1
    %15 = vsyncpa %s14, 0
    %16 = vsyncpa [#allocation6], 0
    %s17 = scalar_lea.sflag [#allocation6], 1
    %18 = vsyncpa %s17, 0
    loop: start=0, step=1, limit=4
    $region2: #{tpu_custom_call.1} parent=1 // loop_pre_header
      _
    $region3: #{tpu_custom_call.1} parent=1 // loop_header
      %s20 = sphi 0, %s24
      %p21 = scmp.ge.s32.totalorder %s20, 4
      %s27 = sphi 0, %s46
      %s28 = sphi 0, %s42
      %s29 = sphi 0, %s38
      %s30 = sphi 0, %s27
      %s31 = sphi 0, %s28
      %s32 = sphi 0, %s29
      %s33 = sphi 0, %s30
      %s34 = sphi 0, %s31
      %s35 = sphi 0, %s32
      %s47 = sphi 0, %s47
      %s49 = sphi 0, %s47
      %s50 = sphi 0, %s49
      %s64 = sphi 0, %s50
      %s72 = sphi 0, %s74
      %s75 = sphi 0, %s72
      %s76 = sphi 0, %s75
      %s92 = sphi 0, %s76
      %s100 = sphi 0, %s102
      %s103 = sphi 0, %s100
      %s104 = sphi 0, %s103
      %s120 = sphi 0, %s104
      %s128 = sphi 0, %s130
      %s131 = sphi 0, %s128
      %s132 = sphi 0, %s131
      %s148 = sphi 0, %s132
      %s156 = sphi 0, %s158
      %s159 = sphi 0, %s156
      %s160 = sphi 0, %s159
      %s176 = sphi 0, %s160
    $region4: #{tpu_custom_call.1} parent=1 // loop_header_branch
      %23 = sbr.rel (%p21) target = $region8
    $region5: #{tpu_custom_call.1} parent=1 // loop_body
      %s25 = ssub.s32 %s20, 1
      %s26 = ssub.s32 %s20, 2
      %s36 = sadd.s32 1, %s29
      %p37 = scmp.ge.s32.totalorder %s36, 1
      %s38 = scalar_select %p37, 0, %s36
      %s39 = sadd.s32 1, %s28
      %s40 = scalar_select %p37, %s39, %s28
      %p41 = scmp.ge.s32.totalorder %s40, 1
      %s42 = scalar_select %p41, 0, %s40
      %s43 = sadd.s32 1, %s27
      %s44 = scalar_select %p41, %s43, %s27
      %p45 = scmp.ge.s32.totalorder %s44, 2
      %s46 = scalar_select %p45, 0, %s44
      %s48 = sadd.s32 %s47, 1
      %p51 = scmp.eq.s32.totalorder %s20, 1
      %p52 = scmp.ne.s32.totalorder %s47, %s49
      %p53 = scmp.eq.s32.totalorder %s20, 0
      %p54 = por %p52, %p53
      %p55 = scmp.ne.s32.totalorder %s47, %s49
      %p56 = scmp.eq.s32.totalorder %s25, 1
      %p57 = por %p55, %p56
      %p58 = scmp.ne.s32.totalorder %s49, %s50
      %p59 = scmp.eq.s32.totalorder %s25, 0
      %p60 = por %p58, %p59
      %p61 = scmp.ne.s32.totalorder %s49, %s50
      %p62 = scmp.eq.s32.totalorder %s26, 1
      %p63 = por %p61, %p62
      %p65 = scmp.ne.s32.totalorder %s50, %s64
      %p66 = scmp.eq.s32.totalorder %s26, 0
      %p67 = por %p65, %p66
      %s68 = ssub.s32 %s27, %s46
      %s69 = ssub.s32 %s28, %s42
      %s70 = sor.u32 %s68, %s69
      %p71 = scmp.eq.s32.totalorder %s70, 0
      %s73 = sadd.s32 %s72, 1
      %s74 = scalar_select %p71, %s72, %s73
      %p77 = pneg %p71
      %p78 = scmp.eq.s32.totalorder %s20, 1
      %p79 = por %p77, %p78
      %p80 = scmp.ne.s32.totalorder %s72, %s75
      %p81 = scmp.eq.s32.totalorder %s20, 0
      %p82 = por %p80, %p81
      %p83 = scmp.ne.s32.totalorder %s72, %s75
      %p84 = scmp.eq.s32.totalorder %s25, 1
      %p85 = por %p83, %p84
      %p86 = scmp.ne.s32.totalorder %s75, %s76
      %p87 = scmp.eq.s32.totalorder %s25, 0
      %p88 = por %p86, %p87
      %p89 = scmp.ne.s32.totalorder %s75, %s76
      %p90 = scmp.eq.s32.totalorder %s26, 1
      %p91 = por %p89, %p90
      %p93 = scmp.ne.s32.totalorder %s76, %s92
      %p94 = scmp.eq.s32.totalorder %s26, 0
      %p95 = por %p93, %p94
      %s96 = ssub.s32 %s27, %s46
      %s97 = ssub.s32 %s29, %s38
      %s98 = sor.u32 %s96, %s97
      %p99 = scmp.eq.s32.totalorder %s98, 0
      %s101 = sadd.s32 %s100, 1
      %s102 = scalar_select %p99, %s100, %s101
      %p105 = pneg %p99
      %p106 = scmp.eq.s32.totalorder %s20, 1
      %p107 = por %p105, %p106
      %p108 = scmp.ne.s32.totalorder %s100, %s103
      %p109 = scmp.eq.s32.totalorder %s20, 0
      %p110 = por %p108, %p109
      %p111 = scmp.ne.s32.totalorder %s100, %s103
      %p112 = scmp.eq.s32.totalorder %s25, 1
      %p113 = por %p111, %p112
      %p114 = scmp.ne.s32.totalorder %s103, %s104
      %p115 = scmp.eq.s32.totalorder %s25, 0
      %p116 = por %p114, %p115
      %p117 = scmp.ne.s32.totalorder %s103, %s104
      %p118 = scmp.eq.s32.totalorder %s26, 1
      %p119 = por %p117, %p118
      %p121 = scmp.ne.s32.totalorder %s104, %s120
      %p122 = scmp.eq.s32.totalorder %s26, 0
      %p123 = por %p121, %p122
      %s124 = ssub.s32 %s29, %s38
      %s125 = ssub.s32 %s28, %s42
      %s126 = sor.u32 %s124, %s125
      %p127 = scmp.eq.s32.totalorder %s126, 0
      %s129 = sadd.s32 %s128, 1
      %s130 = scalar_select %p127, %s128, %s129
      %p133 = pneg %p127
      %p134 = scmp.eq.s32.totalorder %s20, 1
      %p135 = por %p133, %p134
      %p136 = scmp.ne.s32.totalorder %s128, %s131
      %p137 = scmp.eq.s32.totalorder %s20, 0
      %p138 = por %p136, %p137
      %p139 = scmp.ne.s32.totalorder %s128, %s131
      %p140 = scmp.eq.s32.totalorder %s25, 1
      %p141 = por %p139, %p140
      %p142 = scmp.ne.s32.totalorder %s131, %s132
      %p143 = scmp.eq.s32.totalorder %s25, 0
      %p144 = por %p142, %p143
      %p145 = scmp.ne.s32.totalorder %s131, %s132
      %p146 = scmp.eq.s32.totalorder %s26, 1
      %p147 = por %p145, %p146
      %p149 = scmp.ne.s32.totalorder %s132, %s148
      %p150 = scmp.eq.s32.totalorder %s26, 0
      %p151 = por %p149, %p150
      %s152 = ssub.s32 %s27, %s46
      %s153 = ssub.s32 %s28, %s42
      %s154 = sor.u32 %s152, %s153
      %p155 = scmp.eq.s32.totalorder %s154, 0
      %s157 = sadd.s32 %s156, 1
      %s158 = scalar_select %p155, %s156, %s157
      %p161 = pneg %p155
      %p162 = scmp.eq.s32.totalorder %s20, 1
      %p163 = por %p161, %p162
      %p164 = scmp.ne.s32.totalorder %s156, %s159
      %p165 = scmp.eq.s32.totalorder %s20, 0
      %p166 = por %p164, %p165
      %p167 = scmp.ne.s32.totalorder %s156, %s159
      %p168 = scmp.eq.s32.totalorder %s25, 1
      %p169 = por %p167, %p168
      %p170 = scmp.ne.s32.totalorder %s159, %s160
      %p171 = scmp.eq.s32.totalorder %s25, 0
      %p172 = por %p170, %p171
      %p173 = scmp.ne.s32.totalorder %s159, %s160
      %p174 = scmp.eq.s32.totalorder %s26, 1
      %p175 = por %p173, %p174
      %p177 = scmp.ne.s32.totalorder %s160, %s176
      %p178 = scmp.eq.s32.totalorder %s26, 0
      %p179 = por %p177, %p178
      %p180 = scmp.le.s32.totalorder 1, %s20
      %p181 = scmp.lt.s32.totalorder %s20, 3
      %p182 = pnand %p180, %p181
      %p183 = pneg %p182
      // Predicated region
      $region9: #{tpu_custom_call.1} parent=5 // pred_check
        _
      $region10: #{tpu_custom_call.1} parent=5 // pred_check_branch
        %185 = sbr.rel (%p182) target = $region12
      $region11: #{tpu_custom_call.1} parent=5 // pred_region
        %s186 = ssub.s32 %s20, 1
        // Predicated region
        $region13: #{tpu_custom_call.1} parent=11 // pred_check
          %p187 = pneg %p60
        $region14: #{tpu_custom_call.1} parent=11 // pred_check_branch
          %189 = sbr.rel (%p187) target = $region16
        $region15: #{tpu_custom_call.1} parent=11 // pred_region
          _
        $region16: #{tpu_custom_call.1} parent=11 // pred_fallthru
          _
        // Predicated region
        $region17: #{tpu_custom_call.1} parent=11 // pred_check
          %p190 = pneg %p144
        $region18: #{tpu_custom_call.1} parent=11 // pred_check_branch
          %192 = sbr.rel (%p190) target = $region20
        $region19: #{tpu_custom_call.1} parent=11 // pred_region
          %s193 = smul.u32 16, %s32
          %195 = vsyncadd [#allocation8], 0
          %s196 = sadd.s32 %s31, %s193
          %s197 = smul.addr %s196, 8
          %s198 = scalar_lea.hbm %s3, %s197
          %s199 = sshll.u32 %s198, 4
          %s200 = int_to_ptr.hbm [resolvable:$true] %s199
          %s201 = sshll.u32 [#allocation9], 4
          %s202 = int_to_ptr.vmem [resolvable:$true] %s201
          %207 = dma.hbm_to_vmem [thread:$0]  %s200, 2048, %s202, [#allocation8], 128, 128, 8
        $region20: #{tpu_custom_call.1} parent=11 // pred_fallthru
          _
      $region12: #{tpu_custom_call.1} parent=5 // pred_fallthru
        _
      %p208 = scmp.lt.s32.totalorder %s20, 2
      // Predicated region
      $region21: #{tpu_custom_call.1} parent=5 // pred_check
        %p209 = pneg %p208
      $region22: #{tpu_custom_call.1} parent=5 // pred_check_branch
        %211 = sbr.rel (%p209) target = $region24
      $region23: #{tpu_custom_call.1} parent=5 // pred_region
        // Predicated region
        $region25: #{tpu_custom_call.1} parent=23 // pred_check
          %p212 = pneg %p82
        $region26: #{tpu_custom_call.1} parent=23 // pred_check_branch
          %214 = sbr.rel (%p212) target = $region28
        $region27: #{tpu_custom_call.1} parent=23 // pred_region
          %s215 = sand.u32 %s72, 1
          %s216 = scalar_lea.sflag [#allocation5], %s215
          %s217 = sand.u32 %s72, 1
          %s218 = smul.addr %s217, 8
          %s219 = scalar_lea.vmem [#allocation4], %s218
          %221 = vsyncadd %s216, 0
          %s222 = sadd.s32 %s28, %s27
          %s223 = smul.addr %s222, 8
          %s224 = scalar_lea.hbm %s1, %s223
          %s226 = sshll.u32 %s224, 4
          %s227 = int_to_ptr.hbm [resolvable:$true] %s226
          %s228 = sshll.u32 %s219, 4
          %s229 = int_to_ptr.vmem [resolvable:$true] %s228
          %231 = dma.hbm_to_vmem [thread:$0]  %s227, 128, %s229, %s216
        $region28: #{tpu_custom_call.1} parent=23 // pred_fallthru
          _
        // Predicated region
        $region29: #{tpu_custom_call.1} parent=23 // pred_check
          %p232 = pneg %p110
        $region30: #{tpu_custom_call.1} parent=23 // pred_check_branch
          %234 = sbr.rel (%p232) target = $region32
        $region31: #{tpu_custom_call.1} parent=23 // pred_region
          %s235 = sand.u32 %s20, 1
          %s236 = scalar_lea.sflag [#allocation8], %s235
          %s237 = sand.u32 %s100, 1
          %s238 = smul.addr %s237, 8
          %s239 = scalar_lea.vmem [#allocation7], %s238
          %241 = vsyncadd %s236, 0
          %s242 = sadd.s32 %s29, %s27
          %s243 = smul.addr %s242, 8
          %s244 = scalar_lea.hbm %s2, %s243
          %s246 = sshll.u32 %s244, 4
          %s247 = int_to_ptr.hbm [resolvable:$true] %s246
          %s248 = sshll.u32 %s239, 4
          %s249 = int_to_ptr.vmem [resolvable:$true] %s248
          %251 = dma.hbm_to_vmem [thread:$0]  %s247, 128, %s249, %s236
        $region32: #{tpu_custom_call.1} parent=23 // pred_fallthru
          _
      $region24: #{tpu_custom_call.1} parent=5 // pred_fallthru
        _
      %p252 = scmp.le.s32.totalorder 1, %s20
      %p253 = scmp.lt.s32.totalorder %s20, 3
      %p254 = pnand %p252, %p253
      %p255 = pneg %p254
      // Predicated region
      $region33: #{tpu_custom_call.1} parent=5 // pred_check
        _
      $region34: #{tpu_custom_call.1} parent=5 // pred_check_branch
        %257 = sbr.rel (%p254) target = $region36
      $region35: #{tpu_custom_call.1} parent=5 // pred_region
        %s258 = ssub.s32 %s20, 1
        %s259 = sand.u32 %s75, 1
        %s260 = scalar_lea.sflag [#allocation5], %s259
        %s261 = sand.u32 %s75, 1
        %s262 = smul.addr %s261, 8
        %s263 = scalar_lea.vmem [#allocation4], %s262
        // Predicated region
        $region37: #{tpu_custom_call.1} parent=35 // pred_check
          %p264 = pneg %p88
        $region38: #{tpu_custom_call.1} parent=35 // pred_check_branch
          %266 = sbr.rel (%p264) target = $region40
        $region39: #{tpu_custom_call.1} parent=35 // pred_region
          %268 = dma.done %s260, 128
        $region40: #{tpu_custom_call.1} parent=35 // pred_fallthru
          _
        %s269 = sand.u32 %s25, 1
        %s270 = scalar_lea.sflag [#allocation8], %s269
        %s271 = sand.u32 %s103, 1
        %s272 = smul.addr %s271, 8
        %s273 = scalar_lea.vmem [#allocation7], %s272
        // Predicated region
        $region41: #{tpu_custom_call.1} parent=35 // pred_check
          %p274 = pneg %p116
        $region42: #{tpu_custom_call.1} parent=35 // pred_check_branch
          %276 = sbr.rel (%p274) target = $region44
        $region43: #{tpu_custom_call.1} parent=35 // pred_region
          %278 = dma.done %s270, 128
        $region44: #{tpu_custom_call.1} parent=35 // pred_fallthru
          _
        // Predicated region
        $region45: #{tpu_custom_call.1} parent=35 // pred_check
          %p279 = pneg %p144
        $region46: #{tpu_custom_call.1} parent=35 // pred_check_branch
          %281 = sbr.rel (%p279) target = $region48
        $region47: #{tpu_custom_call.1} parent=35 // pred_region
          %283 = dma.done [#allocation8], 2048
        $region48: #{tpu_custom_call.1} parent=35 // pred_fallthru
          _
        %p284 = pneg %p60
        %p285 = pneg %p57
        %s286 = sand.u32 %s75, 1
        %s287 = scalar_lea.sflag [#allocation5], %s286
        %s288 = sand.u32 %s75, 1
        %s289 = smul.addr %s288, 8
        %s290 = scalar_lea.vmem [#allocation4], %s289
        %p291 = pneg %p88
        %p292 = pneg %p85
        %s293 = sand.u32 %s25, 1
        %s294 = scalar_lea.sflag [#allocation8], %s293
        %s295 = sand.u32 %s103, 1
        %s296 = smul.addr %s295, 8
        %s297 = scalar_lea.vmem [#allocation7], %s296
        %p298 = pneg %p116
        %p299 = pneg %p113
        %p300 = pneg %p144
        %p301 = pneg %p141
        %p302 = pneg %p172
        %p303 = pneg %p169
        %s304 = sand.u32 %s159, 1
        %s305 = scalar_lea.sflag [#allocation6], %s304
        %s306 = sand.u32 %s159, 1
        %s307 = smul.addr %s306, 8
        %s308 = scalar_lea.vmem [#allocation10], %s307
        %s309 = smul.u32 16, %s32
        %p310 = scmp.eq.s32.totalorder %s32, 0
        // Predicated region
        $region49: #{tpu_custom_call.1} parent=35 // pred_check
          %p311 = pneg %p310
        $region50: #{tpu_custom_call.1} parent=35 // pred_check_branch
          %313 = sbr.rel (%p311) target = $region52
        $region51: #{tpu_custom_call.1} parent=35 // pred_region
          %314 = vst [vmem:[%s308] sm:$0xff] 0.0
          %vm315 = vcmask 7168
          %316 = vst.msk [vmem:[#allocation2] sm:$0xff] %vm315, 0.0
        $region52: #{tpu_custom_call.1} parent=35 // pred_fallthru
          _
        %v317 = vld [vmem:[%s273] sm:$0xff]
        %v318 = vld [vmem:[%s308] sm:$0xff]
        %v319 = vld [vmem:[#allocation9] sm:$0xff]
        %v320 = vld [vmem:[#allocation9 + $0x8] sm:$0xff]
        %v321 = vld [vmem:[#allocation9 + $0x10] sm:$0xff]
        %v322 = vld [vmem:[#allocation9 + $0x18] sm:$0xff]
        %v323 = vld [vmem:[#allocation9 + $0x20] sm:$0xff]
        %v324 = vld [vmem:[#allocation9 + $0x28] sm:$0xff]
        %v325 = vld [vmem:[#allocation9 + $0x30] sm:$0xff]
        %v326 = vld [vmem:[#allocation9 + $0x38] sm:$0xff]
        %v327 = vld [vmem:[#allocation9 + $0x40] sm:$0xff]
        %v328 = vld [vmem:[#allocation9 + $0x48] sm:$0xff]
        %v329 = vld [vmem:[#allocation9 + $0x50] sm:$0xff]
        %v330 = vld [vmem:[#allocation9 + $0x58] sm:$0xff]
        %v331 = vld [vmem:[#allocation9 + $0x60] sm:$0xff]
        %v332 = vld [vmem:[#allocation9 + $0x68] sm:$0xff]
        %v333 = vld [vmem:[#allocation9 + $0x70] sm:$0xff]
        %v334 = vld [vmem:[#allocation9 + $0x78] sm:$0xff]
        %335 = vmatpush.msra.mxu0 %v334
        %336 = vmatpush.msra.mxu0 %v333
        %337 = vmatpush.msra.mxu0 %v332
        %338 = vmatpush.msra.mxu0 %v331
        %339 = vmatpush.msra.mxu0 %v330
        %340 = vmatpush.msra.mxu0 %v329
        %341 = vmatpush.msra.mxu0 %v328
        %342 = vmatpush.msra.mxu0 %v327
        %343 = vmatpush.msra.mxu0 %v326
        %344 = vmatpush.msra.mxu0 %v325
        %345 = vmatpush.msra.mxu0 %v324
        %346 = vmatpush.msra.mxu0 %v323
        %347 = vmatpush.msra.mxu0 %v322
        %348 = vmatpush.msra.mxu0 %v321
        %349 = vmatpush.msra.mxu0 %v320
        %350 = vmatpush.msra.mxu0 %v319
        %351 = vmatmul.f32.gmra.mxu0 %v317
        %v352 = vpop.f32.mrf.mxu0
        %v353 = vadd.f32 0.0, %v352
        %354 = vdwg.mxu0
        %v355 = vadd.f32 %v318, %v353
        %356 = vst [vmem:[%s308] sm:$0xff] %v355
        %v357 = vld [vmem:[#allocation2] sm:$0xff]
        %358 = vadd.xlane.f32.xlu0 %v317
        %v359 = vpop.xlane.xlu0 %358
        %v360 = vadd.f32 %v357, %v359
        %vm361 = vcmask 7168
        %362 = vst.msk [vmem:[#allocation2] sm:$0xff] %vm361, %v360
        // Predicated region
        $region53: #{tpu_custom_call.1} parent=35 // pred_check
          %p363 = pneg %p310
        $region54: #{tpu_custom_call.1} parent=35 // pred_check_branch
          %365 = sbr.rel (%p363) target = $region56
        $region55: #{tpu_custom_call.1} parent=35 // pred_region
          %s366 = sld [smem:[#allocation3]]
          %v367 = vld [vmem:[%s308] sm:$0xff]
          %v368 = vld [vmem:[#allocation2] sm:$0xff]
          %v369 = vld [vmem:[%s263] sm:$0xff]
          %371 = vset.pattern.permute.xlu0 0
          %372 = vperm.xlu0 %371, %v368
          %v373 = vpop.permute.xlu0 %372
          %v375 = vmul.f32 %v373, %v369
          %v376 = vsub.f32 %v367, %v375
          %v377 = vstv %s366
          %v378 = vmul.f32 %v377, %v376
          %379 = vst [vmem:[%s308] sm:$0xff] %v378
        $region56: #{tpu_custom_call.1} parent=35 // pred_fallthru
          _
        %s380 = sand.u32 %s159, 1
        %s381 = scalar_lea.sflag [#allocation6], %s380
        %s382 = sand.u32 %s159, 1
        %s383 = smul.addr %s382, 8
        %s384 = scalar_lea.vmem [#allocation10], %s383
        // Predicated region
        $region57: #{tpu_custom_call.1} parent=35 // pred_check
          %p385 = pneg %p169
        $region58: #{tpu_custom_call.1} parent=35 // pred_check_branch
          %387 = sbr.rel (%p385) target = $region60
        $region59: #{tpu_custom_call.1} parent=35 // pred_region
          %389 = vsyncadd %s381, 0
          %s390 = sadd.s32 %s31, %s30
          %s391 = smul.addr %s390, 8
          %s392 = scalar_lea.hbm %s4, %s391
          %s394 = sshll.u32 %s384, 4
          %s395 = int_to_ptr.vmem [resolvable:$true] %s394
          %s396 = sshll.u32 %s392, 4
          %s397 = int_to_ptr.hbm [resolvable:$true] %s396
          %399 = dma.vmem_to_hbm [thread:$0]  %s395, 128, %s397, %s381
        $region60: #{tpu_custom_call.1} parent=35 // pred_fallthru
          _
      $region36: #{tpu_custom_call.1} parent=5 // pred_fallthru
        _
      %p400 = scmp.le.s32.totalorder 2, %s20
      // Predicated region
      $region61: #{tpu_custom_call.1} parent=5 // pred_check
        %p401 = pneg %p400
      $region62: #{tpu_custom_call.1} parent=5 // pred_check_branch
        %403 = sbr.rel (%p401) target = $region64
      $region63: #{tpu_custom_call.1} parent=5 // pred_region
        %s404 = ssub.s32 %s20, 2
        // Predicated region
        $region65: #{tpu_custom_call.1} parent=63 // pred_check
          %p405 = pneg %p175
        $region66: #{tpu_custom_call.1} parent=63 // pred_check_branch
          %407 = sbr.rel (%p405) target = $region68
        $region67: #{tpu_custom_call.1} parent=63 // pred_region
          %s408 = sand.u32 %s160, 1
          %s409 = scalar_lea.sflag [#allocation6], %s408
          %s410 = sand.u32 %s160, 1
          %s411 = smul.addr %s410, 8
          %s412 = scalar_lea.vmem [#allocation10], %s411
          %414 = dma.done %s409, 128
        $region68: #{tpu_custom_call.1} parent=63 // pred_fallthru
          _
      $region64: #{tpu_custom_call.1} parent=5 // pred_fallthru
        _
    $region6: #{tpu_custom_call.1} parent=1 // loop_footer
      %s24 = sadd.s32 1, %s20
    $region7: #{tpu_custom_call.1} parent=1 // loop_footer_branch
      %19 = sbr.rel target = $region3
    $region8: #{tpu_custom_call.1} parent=1 // loop_exit
      _
    %415 = vsyncpa [#allocation5], 1
    %s416 = scalar_lea.sflag [#allocation5], 1
    %417 = vsyncpa %s416, 1
    %418 = vsyncpa [#allocation8], 1
    %s419 = scalar_lea.sflag [#allocation8], 1
    %420 = vsyncpa %s419, 1
    %421 = vsyncpa [#allocation6], 1
    %s422 = scalar_lea.sflag [#allocation6], 1
    %423 = vsyncpa %s422, 1

</llo_original>
